<compile_context>
chip_gen: v7x
topology: tpu7x:2x2x1
jax: 0.10.0
libtpu: 0.0.40
codegen_flags: <defaults>
</compile_context>

<pallas_src>
import math
import functools

import jax
import jax.numpy as jnp
from jax.experimental import pallas as pl
from jax.experimental.pallas import tpu as pltpu


def _round_up(x, m):
    return ((x + m - 1) // m) * m


def _sublane_multiple(dtype):
    # f32 -> 8, bf16 -> 16, int8/fp8 -> 32 (sub-32-bit dtypes pack along sublanes)
    itemsize = jnp.dtype(dtype).itemsize
    return max(8, 32 // max(itemsize, 1))


def _pick_tile_rows(n_pad, sublane, itemsize):
    """Large row tiles amortize the ~0.35us per-grid-step overhead; the rows are
    only a few hundred lanes wide so VMEM footprint stays tiny (<~16 MiB even at
    4096 rows).  Cap so the grid keeps >= 2 steps for v7x megacore occupancy."""
    target = max(sublane, (2048 * 4) // max(itemsize, 1))     # 2048 f32 / 4096 bf16
    if n_pad >= 2 * sublane:
        target = min(target, _round_up(pl.cdiv(n_pad, 2), sublane))
    return min(target, n_pad)


# ----------------------------- Pallas kernels ------------------------------- #
def _inter_agg_fused_kernel(w_ref, self_ref, neigh_ref, out_ref, *, n_rel, feat_dim, d):
    # w_ref    : (R, D)         softmax(alpha) weights, f32, resident across grid
    # self_ref : (TM, FEAT)     self features (streamed straight through)
    # neigh_ref: (R, TM, D)     per-relation intra-aggregated embeddings
    # out_ref  : (TM, FEAT+D)   torch.cat((self_feats, weighted_agg), dim=1)
    w = w_ref[...].astype(jnp.float32)
    acc = neigh_ref[0].astype(jnp.float32) * w[0:1, :]
    for r in range(1, n_rel):                       # R is a small static constant
        acc = acc + neigh_ref[r].astype(jnp.float32) * w[r:r + 1, :]
    out_ref[:, :feat_dim] = self_ref[...].astype(out_ref.dtype)
    out_ref[:, feat_dim:feat_dim + d] = acc.astype(out_ref.dtype)


def _inter_agg_kernel(w_ref, neigh_ref, out_ref, *, n_rel):
    # Fallback (FEAT not lane-aligned): aggregate only, concat stays in XLA.
    w = w_ref[...].astype(jnp.float32)
    acc = neigh_ref[0].astype(jnp.float32) * w[0:1, :]
    for r in range(1, n_rel):
        acc = acc + neigh_ref[r].astype(jnp.float32) * w[r:r + 1, :]
    out_ref[...] = acc.astype(out_ref.dtype)


# ------------------------------- wrapper ------------------------------------ #
def inter_agg_forward(alpha, neigh_feats, self_feats, embed_dim, *, tile_rows=None):
    """Mirrors the InterAgg tail: weight_inter_agg(...) then cat((self, agg), 1).

    alpha      : (2*embed_dim, R)   weight parameter (torch layout)
    neigh_feats: (R*n, 2*embed_dim) torch.cat((r1_feats, r2_feats, r3_feats), 0)
    self_feats : (n, FEAT)
    returns    : (n, FEAT + 2*embed_dim)
    """
    d = 2 * embed_dim
    n, feat = self_feats.shape
    n_rel = alpha.shape[1]
    assert neigh_feats.shape == (n_rel * n, d)
    out_dtype = self_feats.dtype

    # softmax over relations: tiny (D, R) array, computed once in XLA -> (R, D)
    w = jax.nn.softmax(alpha.astype(jnp.float32), axis=1).T

    # relation-major concat -> free 3-D view (no transpose / repack copy)
    neigh3 = neigh_feats.reshape(n_rel, n, d)

    s = max(_sublane_multiple(neigh_feats.dtype),
            _sublane_multiple(self_feats.dtype),
            _sublane_multiple(out_dtype))
    n_pad = _round_up(n, s)
    if n_pad != n:   # at most s-1 rows of padding; aligned n pays nothing
        neigh3 = jnp.pad(neigh3, ((0, 0), (0, n_pad - n), (0, 0)))
        self_p = jnp.pad(self_feats, ((0, n_pad - n), (0, 0)))
    else:
        self_p = self_feats

    in_item = jnp.dtype(neigh_feats.dtype).itemsize
    if tile_rows is None:
        tm = _pick_tile_rows(n_pad, s, in_item)
    else:
        tm = min(_round_up(tile_rows, s), n_pad)
    grid = (pl.cdiv(n_pad, tm),)   # Pallas handles the ragged last tile

    cparams = pltpu.CompilerParams(
        dimension_semantics=("parallel",),
        vmem_limit_bytes=32 * 1024 * 1024)

    self_item = jnp.dtype(self_feats.dtype).itemsize
    out_item = jnp.dtype(out_dtype).itemsize

    if feat % 128 == 0:
        # Fuse the final concat into the kernel: write agg past lane offset FEAT.
        cost = pl.CostEstimate(
            flops=2 * n * n_rel * d, transcendentals=0,
            bytes_accessed=(n * n_rel * d * in_item + n * feat * self_item
                            + n * (feat + d) * out_item))
        kernel = functools.partial(_inter_agg_fused_kernel,
                                   n_rel=n_rel, feat_dim=feat, d=d)
        out = pl.pallas_call(
            kernel,
            out_shape=jax.ShapeDtypeStruct((n_pad, feat + d), out_dtype),
            grid=grid,
            in_specs=[
                # (R, D) weights: second-to-last dim == full array extent (legal)
                pl.BlockSpec((n_rel, d), lambda i: (0, 0)),
                pl.BlockSpec((tm, feat), lambda i: (i, 0)),
                pl.BlockSpec((n_rel, tm, d), lambda i: (0, i, 0)),
            ],
            out_specs=pl.BlockSpec((tm, feat + d), lambda i: (i, 0)),
            compiler_params=cparams,
            cost_estimate=cost,
        )(w, self_p, neigh3)
        return out[:n]

    # FEAT not a multiple of 128: aggregate in the kernel, concat in XLA.
    cost = pl.CostEstimate(
        flops=2 * n * n_rel * d, transcendentals=0,
        bytes_accessed=n * n_rel * d * in_item + n * d * out_item)
    kernel = functools.partial(_inter_agg_kernel, n_rel=n_rel)
    agg = pl.pallas_call(
        kernel,
        out_shape=jax.ShapeDtypeStruct((n_pad, d), out_dtype),
        grid=grid,
        in_specs=[
            pl.BlockSpec((n_rel, d), lambda i: (0, 0)),
            pl.BlockSpec((n_rel, tm, d), lambda i: (0, i, 0)),
        ],
        out_specs=pl.BlockSpec((tm, d), lambda i: (i, 0)),
        compiler_params=cparams,
        cost_estimate=cost,
    )(w, neigh3)
    return jnp.concatenate([self_feats, agg[:n]], axis=1)


# ------------------------------ host glue ----------------------------------- #
def build_neighbor_tables(neigh_lists, unique_idx):
    """Padded fixed-degree neighbor index / mask tables (vectorized mean)."""
    deg = max(max(len(s) for s in neigh_lists), 1)
    idx_rows, msk_rows = [], []
    for sset in neigh_lists:
        mapped = [unique_idx[v] for v in sorted(sset)]
        pad = deg - len(mapped)
        idx_rows.append(mapped + [0] * pad)
        msk_rows.append([1.0] * len(mapped) + [0.0] * pad)
    return (jnp.array(idx_rows, dtype=jnp.int32),
            jnp.array(msk_rows, dtype=jnp.float32))


def intra_agg_mean(feat_embed, idx, msk, self_embed):
    """Vectorized mean intra-relation aggregator -> (n, 2*embed) = cat(self, mean)."""
    gathered = feat_embed[idx]                                    # (n, deg, EMBED)
    denom = jnp.maximum(msk.sum(axis=1, keepdims=True), 1.0)      # empty-set guard
    mean_f = (gathered * msk[:, :, None].astype(gathered.dtype)).sum(axis=1)
    mean_f = mean_f / denom.astype(gathered.dtype)
    return jnp.concatenate([self_embed, mean_f], axis=1)


def _reference(alpha, neigh_feats, self_feats, embed_dim):
    """Pure-JAX reference of weight_inter_agg + concat (torch semantics), f32."""
    d = 2 * embed_dim
    n = self_feats.shape[0]
    n_rel = alpha.shape[1]
    w = jax.nn.softmax(alpha.astype(jnp.float32), axis=1)         # (D, R)
    neigh_h = neigh_feats.astype(jnp.float32).T                   # (D, R*n)
    agg = jnp.zeros((d, n), jnp.float32)
    for r in range(n_rel):
        agg = agg + w[:, r:r + 1] * neigh_h[:, r * n:(r + 1) * n]
    return jnp.concatenate([self_feats.astype(jnp.float32), agg.T], axis=1)


if __name__ == "__main__":
    key = jax.random.PRNGKey(0)

    NUM_NODES = 32       # total nodes in the graph
    FEAT = 128           # full input feature dim
    EMBED = 64           # embed_dim; the inter-agg operates on 2*EMBED = 128
    R = 3                # number of relations
    nodes = list(range(8))
    n = len(nodes)

    k_feat, k_alpha, k_big = jax.random.split(key, 3)
    features = jax.random.normal(k_feat, (NUM_NODES, FEAT), dtype=jnp.float32)

    # nn.init.xavier_uniform_ on alpha of shape (2*EMBED, 3)
    fan_in, fan_out = 2 * EMBED, R
    bound = math.sqrt(6.0 / (fan_in + fan_out))
    alpha = jax.random.uniform(k_alpha, (2 * EMBED, R), minval=-bound, maxval=bound,
                               dtype=jnp.float32)

    # Deterministic synthetic single-relation adjacency lists.
    adj_lists = []
    for r in range(R):
        adj = {v: [(v + r + 1) % NUM_NODES,
                   (2 * v + 3 * r + 5) % NUM_NODES,
                   (v * v + r) % NUM_NODES] for v in range(NUM_NODES)}
        adj_lists.append(adj)

    # --- forward-pass glue mirroring InterAgg.forward --------------------------
    to_neighs = [[set(adj[int(v)]) for v in nodes] for adj in adj_lists]
    unique_nodes = sorted(set.union(set.union(*to_neighs[0]),
                                    set.union(*to_neighs[1]),
                                    set.union(*to_neighs[2], set(nodes))))
    unique_idx = {v: i for i, v in enumerate(unique_nodes)}

    batch_features = features[jnp.array(unique_nodes, dtype=jnp.int32)]
    center_idx = jnp.array([unique_idx[int(v)] for v in nodes], dtype=jnp.int32)
    self_feats = batch_features[center_idx]                   # (n, FEAT)

    feat_embed = batch_features[:, -EMBED:]
    self_embed = self_feats[:, -EMBED:]
    r_feats = []
    for r in range(R):
        idx, msk = build_neighbor_tables(to_neighs[r], unique_idx)
        r_feats.append(intra_agg_mean(feat_embed, idx, msk, self_embed))
    neigh_feats = jnp.concatenate(r_feats, axis=0)            # (R*n, 2*EMBED)

    # --- Pallas kernel: weight_inter_agg + fused concat (module semantics) -----
    out = jax.block_until_ready(inter_agg_forward(alpha, neigh_feats, self_feats, EMBED))
    ref = _reference(alpha, neigh_feats, self_feats, EMBED)
    assert out.shape == (n, FEAT + 2 * EMBED)
    assert jnp.allclose(out, ref, atol=1e-5), float(jnp.max(jnp.abs(out - ref)))

    # --- larger batch: exercises multi-step grid (megacore) + ragged last tile -
    n_big = 1000
    kb1, kb2 = jax.random.split(k_big)
    big_neigh = jax.random.normal(kb1, (R * n_big, 2 * EMBED), dtype=jnp.float32)
    big_self = jax.random.normal(kb2, (n_big, FEAT), dtype=jnp.float32)
    ref_big = _reference(alpha, big_neigh, big_self, EMBED)

    out_big = jax.block_until_ready(inter_agg_forward(alpha, big_neigh, big_self, EMBED))
    assert out_big.shape == (n_big, FEAT + 2 * EMBED)
    assert jnp.allclose(out_big, ref_big, atol=1e-5), \
        float(jnp.max(jnp.abs(out_big - ref_big)))

    out_big2 = jax.block_until_ready(
        inter_agg_forward(alpha, big_neigh, big_self, EMBED, tile_rows=256))
    assert jnp.allclose(out_big2, ref_big, atol=1e-5)

    # --- bf16 I/O path (halves HBM bytes; f32 accumulation inside the kernel) --
    out_bf16 = jax.block_until_ready(
        inter_agg_forward(alpha, big_neigh.astype(jnp.bfloat16),
                          big_self.astype(jnp.bfloat16), EMBED))
    assert out_bf16.dtype == jnp.bfloat16
    assert jnp.allclose(out_bf16.astype(jnp.float32), ref_big, atol=5e-2, rtol=5e-2)

    # --- FEAT not lane-aligned -> fallback path (agg kernel + XLA concat) ------
    small_self = self_feats[:, :EMBED]                        # (n, 64)
    out_small = jax.block_until_ready(
        inter_agg_forward(alpha, neigh_feats, small_self, EMBED))
    ref_small = _reference(alpha, neigh_feats, small_self, EMBED)
    assert out_small.shape == (n, EMBED + 2 * EMBED)
    assert jnp.allclose(out_small, ref_small, atol=1e-5)

    # TODO(synk): the Python-set neighbor sampling / dict re-indexing and the
    # (unspecified) IntraAgg submodules have no clean tensor-kernel equivalent;
    # they stay as host-side glue (here with a vectorized masked-mean aggregator).
    print("KERNEL_OK")
</pallas_src>

<mosaic_0001>
module attributes {stable_mosaic.version = 11 : i64} {
  func.func @_inter_agg_fused_kernel(%arg0: i32, %arg1: memref<3x128xf32, #tpu.memory_space<vmem>>, %arg2: memref<8x128xf32, #tpu.memory_space<vmem>>, %arg3: memref<3x8x128xf32, #tpu.memory_space<vmem>>, %arg4: memref<8x256xf32, #tpu.memory_space<vmem>>) attributes {dimension_semantics = [#tpu.dimension_semantics<parallel>], iteration_bounds = array<i64: 1>, scalar_prefetch = 0 : i64, scratch_operands = 0 : i64, tpu.core_type = #tpu.core_type<tc>, window_params = [{pipeline_mode = #tpu.pipeline_mode<synchronous>, transform_indices = @transform_0, window_bounds = array<i64: 3, 128>}, {transform_indices = @transform_1, window_bounds = array<i64: 8, 128>}, {transform_indices = @transform_2, window_bounds = array<i64: 3, 8, 128>}, {transform_indices = @transform_3, window_bounds = array<i64: 8, 256>}]} {
    %c0 = arith.constant 0 : index
    %c0_0 = arith.constant 0 : index
    %0 = vector.load %arg1[%c0, %c0_0] : memref<3x128xf32, #tpu.memory_space<vmem>>, vector<3x128xf32>
    %c0_1 = arith.constant 0 : index
    %c0_2 = arith.constant 0 : index
    %c0_3 = arith.constant 0 : index
    %1 = vector.load %arg3[%c0_1, %c0_2, %c0_3] : memref<3x8x128xf32, #tpu.memory_space<vmem>>, vector<1x8x128xf32>
    %2 = vector.shape_cast %1 : vector<1x8x128xf32> to vector<8x128xf32>
    %3 = vector.extract_strided_slice %0 {offsets = [0, 0], sizes = [1, 128], strides = [1, 1]} : vector<3x128xf32> to vector<1x128xf32>
    %4 = vector.broadcast %3 : vector<1x128xf32> to vector<8x128xf32>
    %5 = arith.mulf %2, %4 : vector<8x128xf32>
    %c1 = arith.constant 1 : index
    %c0_4 = arith.constant 0 : index
    %c0_5 = arith.constant 0 : index
    %6 = vector.load %arg3[%c1, %c0_4, %c0_5] : memref<3x8x128xf32, #tpu.memory_space<vmem>>, vector<1x8x128xf32>
    %7 = vector.shape_cast %6 : vector<1x8x128xf32> to vector<8x128xf32>
    %8 = vector.extract_strided_slice %0 {offsets = [1, 0], sizes = [1, 128], strides = [1, 1]} : vector<3x128xf32> to vector<1x128xf32>
    %9 = vector.broadcast %8 : vector<1x128xf32> to vector<8x128xf32>
    %10 = arith.mulf %7, %9 : vector<8x128xf32>
    %11 = arith.addf %5, %10 : vector<8x128xf32>
    %c2 = arith.constant 2 : index
    %c0_6 = arith.constant 0 : index
    %c0_7 = arith.constant 0 : index
    %12 = vector.load %arg3[%c2, %c0_6, %c0_7] : memref<3x8x128xf32, #tpu.memory_space<vmem>>, vector<1x8x128xf32>
    %13 = vector.shape_cast %12 : vector<1x8x128xf32> to vector<8x128xf32>
    %14 = vector.extract_strided_slice %0 {offsets = [2, 0], sizes = [1, 128], strides = [1, 1]} : vector<3x128xf32> to vector<1x128xf32>
    %15 = vector.broadcast %14 : vector<1x128xf32> to vector<8x128xf32>
    %16 = arith.mulf %13, %15 : vector<8x128xf32>
    %17 = arith.addf %11, %16 : vector<8x128xf32>
    %c0_8 = arith.constant 0 : index
    %c0_9 = arith.constant 0 : index
    %18 = vector.load %arg2[%c0_8, %c0_9] : memref<8x128xf32, #tpu.memory_space<vmem>>, vector<8x128xf32>
    %c0_10 = arith.constant 0 : index
    %c0_11 = arith.constant 0 : index
    %19 = vector.load %arg4[%c0_10, %c0_11] : memref<8x256xf32, #tpu.memory_space<vmem>>, vector<8x128xf32>
    tpu.vector_store %arg4[%c0_10, %c0_11], %18 {strides = array<i32>} : memref<8x256xf32, #tpu.memory_space<vmem>>, vector<8x128xf32>,
    %c0_12 = arith.constant 0 : index
    %c128 = arith.constant 128 : index
    %20 = vector.load %arg4[%c0_12, %c128] : memref<8x256xf32, #tpu.memory_space<vmem>>, vector<8x128xf32>
    tpu.vector_store %arg4[%c0_12, %c128], %17 {strides = array<i32>} : memref<8x256xf32, #tpu.memory_space<vmem>>, vector<8x128xf32>,
    return
  }
  func.func @transform_0(%arg0: i32) -> (i32, i32) {
    %c0_i32 = arith.constant 0 : i32
    %c0_i32_0 = arith.constant 0 : i32
    %c0_i32_1 = arith.constant 0 : i32
    return %c0_i32, %c0_i32_0 : i32, i32
  }
  func.func @transform_1(%arg0: i32) -> (i32, i32) {
    %c0_i32 = arith.constant 0 : i32
    %c0_i32_0 = arith.constant 0 : i32
    return %arg0, %c0_i32 : i32, i32
  }
  func.func @transform_2(%arg0: i32) -> (i32, i32, i32) {
    %c0_i32 = arith.constant 0 : i32
    %c0_i32_0 = arith.constant 0 : i32
    %c0_i32_1 = arith.constant 0 : i32
    return %c0_i32, %arg0, %c0_i32_0 : i32, i32, i32
  }
  func.func @transform_3(%arg0: i32) -> (i32, i32) {
    %c0_i32 = arith.constant 0 : i32
    %c0_i32_0 = arith.constant 0 : i32
    return %arg0, %c0_i32 : i32, i32
  }
}

</mosaic_0001>

<llo_original>
// kernel: tpu_custom_call.1
$region0: #{tpu_custom_call.1}
  #allocation0 [shape = 'u32[]', space=smem, size = 0x4, offset = 0x4, fixed_abs, tag = 'smem constant byte address 0x4 - core index']
  #allocation1 [shape = 'u32[144,128]{1,0:T(1,128)}', space=vmem, size = 0x12000, scoped, tag = 'internal scratch']
  %s0 = inlined_call_operand.hbm [shape: f32[3,128], index: 0, kind: input, shape index: {}]
  %s1 = inlined_call_operand.hbm [shape: f32[8,128], index: 1, kind: input, shape index: {}]
  %s2 = inlined_call_operand.hbm [shape: f32[3,8,128], index: 2, kind: input, shape index: {}]
  %s3 = inlined_call_operand.hbm [shape: f32[8,256], index: 3, kind: output, shape index: {}]
  %s4 = sld [smem:[#allocation0]]
  $region34: #{tpu_custom_call.1} parent=0
    _
  %s6 = ssub.s32 1, %s4
  %s7 = scalar_select 0, %s6, %s4
  $region1: #{tpu_custom_call.1} parent=0
    #allocation2 [shape = 'u8[2048]{0}', space=vmem, size = 0x800, scoped, tag = 'input window, operand 0, single buffered']
    #allocation3 [shape = 's32[1]{0}', space=sflag, size = 0x4, scoped, tag = 'scoped memory for tpu_custom_call.1']
    #allocation4 [shape = 's32[1]{0}', space=sflag, size = 0x4, scoped, tag = 'scoped memory for tpu_custom_call.1']
    #allocation5 [shape = 'u8[4096]{0}', space=vmem, size = 0x1000, scoped, tag = 'input window, operand 1, single buffered']
    #allocation6 [shape = 's32[1]{0}', space=sflag, size = 0x4, scoped, tag = 'scoped memory for tpu_custom_call.1']
    #allocation7 [shape = 'u8[12288]{0}', space=vmem, size = 0x3000, scoped, tag = 'input window, operand 2, single buffered']
    #allocation8 [shape = 'u8[8192]{0}', space=vmem, size = 0x2000, scoped, tag = 'output window, operand 0, single buffered']
    %8 = vsyncpa [#allocation3], 0
    %9 = vsyncpa [#allocation6], 0
    %10 = vsyncpa [#allocation4], 0
    // Predicated region
    $region2: #{tpu_custom_call.1} parent=1 // pred_check
      _
    $region3: #{tpu_custom_call.1} parent=1 // pred_check_branch
      %12 = sbr.rel (0) target = $region5
    $region4: #{tpu_custom_call.1} parent=1 // pred_region
      %s14 = ssub.s32 64, 64
      %15 = vsyncadd [#allocation3], %s14
      %s17 = sshll.u32 [#allocation2], 4
      %s18 = int_to_ptr.vmem [resolvable:$true] %s17
      %20 = dma.hbm_to_vmem [thread:$0]  %s0, 64, %s18, [#allocation3]
    $region5: #{tpu_custom_call.1} parent=1 // pred_fallthru
      _
    // Predicated region
    $region6: #{tpu_custom_call.1} parent=1 // pred_check
      _
    $region7: #{tpu_custom_call.1} parent=1 // pred_check_branch
      %22 = sbr.rel (0) target = $region9
    $region8: #{tpu_custom_call.1} parent=1 // pred_region
      %s24 = ssub.s32 128, 128
      %25 = vsyncadd [#allocation6], %s24
      %s27 = sshll.u32 [#allocation5], 4
      %s28 = int_to_ptr.vmem [resolvable:$true] %s27
      %30 = dma.hbm_to_vmem [thread:$0]  %s1, 128, %s28, [#allocation6]
    $region9: #{tpu_custom_call.1} parent=1 // pred_fallthru
      _
    // Predicated region
    $region10: #{tpu_custom_call.1} parent=1 // pred_check
      _
    $region11: #{tpu_custom_call.1} parent=1 // pred_check_branch
      %32 = sbr.rel (0) target = $region13
    $region12: #{tpu_custom_call.1} parent=1 // pred_region
      %s34 = ssub.s32 384, 384
      %35 = vsyncadd [#allocation6], %s34
      %s36 = sshll.u32 [#allocation7], 4
      %s37 = int_to_ptr.vmem [resolvable:$true] %s36
      %42 = dma.hbm_to_vmem [thread:$0]  %s2, 384, %s37, [#allocation6], 128, 128, 8
    $region13: #{tpu_custom_call.1} parent=1 // pred_fallthru
      _
    // Predicated region
    $region14: #{tpu_custom_call.1} parent=1 // pred_check
      _
    $region15: #{tpu_custom_call.1} parent=1 // pred_check_branch
      %44 = sbr.rel (0) target = $region17
    $region16: #{tpu_custom_call.1} parent=1 // pred_region
      %45 = dma.done [#allocation3], 64
    $region17: #{tpu_custom_call.1} parent=1 // pred_fallthru
      _
    // Predicated region
    $region18: #{tpu_custom_call.1} parent=1 // pred_check
      _
    $region19: #{tpu_custom_call.1} parent=1 // pred_check_branch
      %47 = sbr.rel (0) target = $region21
    $region20: #{tpu_custom_call.1} parent=1 // pred_region
      %48 = dma.done [#allocation6], 128
    $region21: #{tpu_custom_call.1} parent=1 // pred_fallthru
      _
    // Predicated region
    $region22: #{tpu_custom_call.1} parent=1 // pred_check
      _
    $region23: #{tpu_custom_call.1} parent=1 // pred_check_branch
      %50 = sbr.rel (0) target = $region25
    $region24: #{tpu_custom_call.1} parent=1 // pred_region
      %51 = dma.done [#allocation6], 384
    $region25: #{tpu_custom_call.1} parent=1 // pred_fallthru
      _
    %v52 = vld [vmem:[#allocation2] sm:$0x7]
    %v53 = vld [vmem:[#allocation7] sm:$0xff]
    %v54 = vlaneseq
    %v55 = vshrl.u32 %v54, 7
    %v56 = vsub.s32 0, %v55
    %v57 = vrot.slane %v52, %v56
    %v58 = vmul.f32 %v53, %v57
    %s59 = scalar_lea.vmem [#allocation7], 8
    %v60 = vld [vmem:[%s59] sm:$0xff]
    %v61 = vlaneseq
    %v62 = vshrl.u32 %v61, 7
    %v63 = vsub.s32 1, %v62
    %v64 = vrot.slane %v52, %v63
    %v65 = vmul.f32 %v60, %v64
    %v66 = vadd.f32 %v58, %v65
    %s67 = scalar_lea.vmem [#allocation7], 16
    %v68 = vld [vmem:[%s67] sm:$0xff]
    %v69 = vlaneseq
    %v70 = vshrl.u32 %v69, 7
    %v71 = vsub.s32 2, %v70
    %v72 = vrot.slane %v52, %v71
    %v73 = vmul.f32 %v68, %v72
    %v74 = vadd.f32 %v66, %v73
    %v75 = vld [vmem:[#allocation5] sm:$0xff]
    %76 = vst [vmem:[#allocation8] sm:$0xff] %v75
    %77 = vst [vmem:[#allocation8 + $0x8] sm:$0xff] %v74
    // Predicated region
    $region26: #{tpu_custom_call.1} parent=1 // pred_check
      _
    $region27: #{tpu_custom_call.1} parent=1 // pred_check_branch
      %79 = sbr.rel (0) target = $region29
    $region28: #{tpu_custom_call.1} parent=1 // pred_region
      %s81 = ssub.s32 256, 256
      %82 = vsyncadd [#allocation4], %s81
      %s84 = sshll.u32 [#allocation8], 4
      %s85 = int_to_ptr.vmem [resolvable:$true] %s84
      %87 = dma.vmem_to_hbm [thread:$0]  %s85, 256, %s3, [#allocation4]
    $region29: #{tpu_custom_call.1} parent=1 // pred_fallthru
      _
    // Predicated region
    $region30: #{tpu_custom_call.1} parent=1 // pred_check
      _
    $region31: #{tpu_custom_call.1} parent=1 // pred_check_branch
      %89 = sbr.rel (0) target = $region33
    $region32: #{tpu_custom_call.1} parent=1 // pred_region
      %90 = dma.done [#allocation4], 256
    $region33: #{tpu_custom_call.1} parent=1 // pred_fallthru
      _
    %91 = vsyncpa [#allocation3], 1
    %92 = vsyncpa [#allocation6], 1
    %93 = vsyncpa [#allocation4], 1

</llo_original>
